<compile_context>
chip_gen: v7x
topology: tpu7x:2x2x1
jax: 0.10.0
libtpu: 0.0.40
codegen_flags: <defaults>
</compile_context>

<pallas_src>
import math

import jax
import jax.numpy as jnp
from jax.experimental import pallas as pl
from jax.experimental.pallas import tpu as pltpu

_LANES = 128
_VMEM_LIMIT_BYTES = 32 * 1024 * 1024  # explicit scoped-VMEM request, safe on v5e/v6e/v7x


def _vmem_capacity_bytes() -> int:
    """Generation-aware VMEM query; falls back to the smallest (v7x-class) value."""
    try:
        return int(pltpu.get_tpu_info().vmem_capacity_bytes)
    except Exception:
        return 64 * 1024 * 1024


def _block_bytes(has_scale_block: bool) -> int:
    # Live VMEM ~= 2 * (in + out [+ scale column]) blocks; keep it comfortably
    # under the 32 MiB scoped limit requested below on every generation.
    cap = _vmem_capacity_bytes()
    target = (2 if has_scale_block else 4) * 1024 * 1024
    return max(512 * 1024, min(target, cap // 16))


def _balanced_tile(total: int, max_tile: int, multiple: int) -> int:
    """Largest tile <= ~max_tile (multiple of `multiple`) giving near-equal blocks."""
    if total <= max_tile:
        return total                      # single full-extent block (layout-legal)
    n_blocks = -(-total // max_tile)
    tile = -(-total // n_blocks)
    tile = -(-tile // multiple) * multiple
    return min(tile, total)


# ----------------------------- kernels ------------------------------------- #

def _drop_path_sample_kernel(scale_ref, x_ref, o_ref):
    """Sample-major path. scale_ref: (B,) f32 in SMEM; x/o: (1, tr, 128) tiles."""
    b = pl.program_id(1)
    x = x_ref[...]
    o_ref[...] = x * scale_ref[b].astype(x.dtype)


def _drop_path_rowscale_kernel(scale_ref, x_ref, o_ref):
    """Row-folded / flat paths. scale_ref: (tr, 1) in x.dtype; x/o: (tr, n) tiles."""
    o_ref[...] = x_ref[...] * scale_ref[...]


# ----------------------------- wrapper -------------------------------------- #

def drop_path(x, drop_prob: float = 0.0, training: bool = False, *, key=None):
    """JAX/Pallas equivalent of the PyTorch `drop_path` function."""
    if drop_prob == 0.0 or not training:
        return x
    if not 0.0 <= float(drop_prob) < 1.0:
        raise ValueError(f"drop_prob must be in [0, 1), got {drop_prob}")
    if key is None:
        raise ValueError("drop_path requires an explicit PRNG `key` in training mode")

    keep_prob = 1.0 - float(drop_prob)
    orig_shape = x.shape
    B = x.shape[0]
    N = math.prod(x.shape[1:]) if x.ndim > 1 else 1
    if B == 0 or N == 0:
        return x

    itemsize = jnp.dtype(x.dtype).itemsize

    # Per-sample keep decision, matching torch: floor(keep_prob + U[0,1)).
    # Fold in the 1/keep_prob rescale so the kernel is a single multiply.
    r = jax.random.uniform(key, (B,), dtype=jnp.float32)
    scale = jnp.floor(keep_prob + r) * (1.0 / keep_prob)   # (B,) f32 in {0, 1/kp}
    # TODO(synk): for latency-critical tiny activations the mask could be drawn
    # in-kernel with pltpu.prng_seed / pltpu.prng_random_bits instead.

    if N % _LANES == 0:
        rows = N // _LANES

        # ---- path 1: sample-major (each sample's slab >= ~1 MiB) ----
        if rows * _LANES * itemsize >= (1 << 20):
            x3 = x.reshape(B, rows, _LANES)
            tr_max = max(8, (_block_bytes(False) // (_LANES * itemsize)) // 8 * 8)
            tr = _balanced_tile(rows, tr_max, 8)
            grid = (pl.cdiv(rows, tr), B)   # long row-tile axis first (v7x megacore)
            out = pl.pallas_call(
                _drop_path_sample_kernel,
                out_shape=jax.ShapeDtypeStruct(x3.shape, x.dtype),
                grid=grid,
                in_specs=[
                    pl.BlockSpec(memory_space=pltpu.MemorySpace.SMEM),   # (B,) scale
                    pl.BlockSpec((1, tr, _LANES), lambda j, b: (b, j, 0)),
                ],
                out_specs=pl.BlockSpec((1, tr, _LANES), lambda j, b: (b, j, 0)),
                compiler_params=pltpu.CompilerParams(
                    dimension_semantics=("parallel", "parallel"),
                    vmem_limit_bytes=_VMEM_LIMIT_BYTES),
            )(scale, x3)
            return out.reshape(orig_shape)

        # ---- path 2: row-folded (small per-sample slab, possibly large B) ----
        total_rows = B * rows
        x2 = x.reshape(total_rows, _LANES)
        scale_col = jnp.repeat(scale, rows).astype(x.dtype)[:, None]   # (B*rows, 1)
        tr_max = max(8, (_block_bytes(True) // (_LANES * itemsize)) // 8 * 8)
        tr = _balanced_tile(total_rows, tr_max, 8)
        grid = (pl.cdiv(total_rows, tr),)
        out = pl.pallas_call(
            _drop_path_rowscale_kernel,
            out_shape=jax.ShapeDtypeStruct((total_rows, _LANES), x.dtype),
            grid=grid,
            in_specs=[
                pl.BlockSpec((tr, 1), lambda i: (i, 0)),
                pl.BlockSpec((tr, _LANES), lambda i: (i, 0)),
            ],
            out_specs=pl.BlockSpec((tr, _LANES), lambda i: (i, 0)),
            compiler_params=pltpu.CompilerParams(
                dimension_semantics=("parallel",),
                vmem_limit_bytes=_VMEM_LIMIT_BYTES),
        )(scale_col, x2)
        return out.reshape(orig_shape)

    # ---- path 3: ragged feature size (N % 128 != 0) ----
    # Full-N lane blocks where possible so only the last lane block takes masked
    # stores; the per-sample tail is < 128 elements so this stays near lane-dense
    # without the extra full-array copies a bulk+tail split would cost in XLA.
    x2 = x.reshape(B, N)
    scale2 = scale.astype(x.dtype)[:, None]                             # (B, 1)
    blk_bytes = _block_bytes(True)
    max_tn = max(_LANES, (blk_bytes // (8 * itemsize)) // _LANES * _LANES)
    tn = N if N <= max_tn else max_tn
    tb_max = max(8, (blk_bytes // max(tn * itemsize, 1)) // 8 * 8)
    tb = _balanced_tile(B, tb_max, 8)
    grid = (pl.cdiv(B, tb), pl.cdiv(N, tn))
    out = pl.pallas_call(
        _drop_path_rowscale_kernel,
        out_shape=jax.ShapeDtypeStruct((B, N), x.dtype),
        grid=grid,
        in_specs=[
            pl.BlockSpec((tb, 1), lambda i, j: (i, 0)),
            pl.BlockSpec((tb, tn), lambda i, j: (i, j)),
        ],
        out_specs=pl.BlockSpec((tb, tn), lambda i, j: (i, j)),
        compiler_params=pltpu.CompilerParams(
            dimension_semantics=("parallel", "parallel"),
            vmem_limit_bytes=_VMEM_LIMIT_BYTES),
    )(scale2, x2)
    return out.reshape(orig_shape)


class DropPath:
    """Drop paths (Stochastic Depth) per sample — Pallas-backed forward."""

    def __init__(self, drop_prob=None):
        self.drop_prob = 0.0 if drop_prob is None else float(drop_prob)
        self.training = True  # mirrors nn.Module default train() state

    def __call__(self, x, key=None):
        return drop_path(x, self.drop_prob, self.training, key=key)


# ------------------------------- test --------------------------------------- #

def _ref_drop_path(x, drop_prob, key):
    """Pure-JAX reference mirroring the kernel math (and the torch semantics)."""
    keep_prob = 1.0 - drop_prob
    r = jax.random.uniform(key, (x.shape[0],), dtype=jnp.float32)
    s = jnp.floor(keep_prob + r) * (1.0 / keep_prob)
    s = s.astype(x.dtype).reshape((x.shape[0],) + (1,) * (x.ndim - 1))
    return x * s


if __name__ == "__main__":
    root = jax.random.PRNGKey(0)
    k_x, k_mask, k_x2, k_x3, k_x4 = jax.random.split(root, 5)

    drop_prob = 0.3
    module = DropPath(drop_prob=drop_prob)
    module.training = True

    # --- row-folded path, f32: (2, 4, 16, 16), N = 1024 (8 rows/sample) ---
    x = jax.random.normal(k_x, (2, 4, 16, 16), dtype=jnp.float32)
    y = jax.block_until_ready(module(x, key=k_mask))
    assert y.shape == x.shape and y.dtype == x.dtype
    assert jnp.allclose(y, _ref_drop_path(x, drop_prob, k_mask), atol=1e-5, rtol=1e-5)

    # --- row-folded path, bf16 (native-dtype multiply inside the kernel) ---
    xb = x.astype(jnp.bfloat16)
    yb = jax.block_until_ready(module(xb, key=k_mask))
    assert yb.dtype == jnp.bfloat16
    assert jnp.allclose(yb.astype(jnp.float32),
                        _ref_drop_path(xb, drop_prob, k_mask).astype(jnp.float32),
                        atol=2e-2, rtol=2e-2)

    # --- sample-major path: (2, 4, 64, 1024), rows = 2048 per sample ---
    x_big = jax.random.normal(k_x3, (2, 4, 64, 1024), dtype=jnp.float32)
    y_big = jax.block_until_ready(module(x_big, key=k_mask))
    assert jnp.allclose(y_big, _ref_drop_path(x_big, drop_prob, k_mask),
                        atol=1e-5, rtol=1e-5)

    # --- row-folded path with large B, tiny feature size: (64, 2, 8, 8) ---
    x_wide = jax.random.normal(k_x4, (64, 2, 8, 8), dtype=jnp.float32)
    y_wide = jax.block_until_ready(module(x_wide, key=k_mask))
    assert jnp.allclose(y_wide, _ref_drop_path(x_wide, drop_prob, k_mask),
                        atol=1e-5, rtol=1e-5)

    # --- ragged fallback path (feature size 3*5*7 = 105, not a multiple of 128) ---
    x_odd = jax.random.normal(k_x2, (2, 3, 5, 7), dtype=jnp.float32)
    y_odd = jax.block_until_ready(module(x_odd, key=k_mask))
    assert jnp.allclose(y_odd, _ref_drop_path(x_odd, drop_prob, k_mask),
                        atol=1e-5, rtol=1e-5)

    # --- eval mode / drop_prob == 0 must be identity ---
    module.training = False
    assert jnp.array_equal(jax.block_until_ready(module(x, key=k_mask)), x)
    module.training = True
    module.drop_prob = 0.0
    assert jnp.array_equal(jax.block_until_ready(module(x, key=k_mask)), x)

    print("KERNEL_OK")
</pallas_src>

<mosaic_0001>
module attributes {stable_mosaic.version = 11 : i64} {
  func.func @_drop_path_rowscale_kernel(%arg0: i32, %arg1: memref<16x1xf32, #tpu.memory_space<vmem>>, %arg2: memref<16x128xf32, #tpu.memory_space<vmem>>, %arg3: memref<16x128xf32, #tpu.memory_space<vmem>>) attributes {dimension_semantics = [#tpu.dimension_semantics<parallel>], iteration_bounds = array<i64: 1>, scalar_prefetch = 0 : i64, scratch_operands = 0 : i64, tpu.core_type = #tpu.core_type<tc>, window_params = [{transform_indices = @transform_0, window_bounds = array<i64: 16, 1>}, {transform_indices = @transform_1, window_bounds = array<i64: 16, 128>}, {transform_indices = @transform_2, window_bounds = array<i64: 16, 128>}]} {
    %c0 = arith.constant 0 : index
    %c0_0 = arith.constant 0 : index
    %0 = vector.load %arg2[%c0, %c0_0] : memref<16x128xf32, #tpu.memory_space<vmem>>, vector<16x128xf32>
    %c0_1 = arith.constant 0 : index
    %c0_2 = arith.constant 0 : index
    %1 = vector.load %arg1[%c0_1, %c0_2] : memref<16x1xf32, #tpu.memory_space<vmem>>, vector<16x1xf32>
    %2 = vector.broadcast %1 : vector<16x1xf32> to vector<16x128xf32>
    %3 = arith.mulf %0, %2 : vector<16x128xf32>
    %c0_3 = arith.constant 0 : index
    %c0_4 = arith.constant 0 : index
    %4 = vector.load %arg3[%c0_3, %c0_4] : memref<16x128xf32, #tpu.memory_space<vmem>>, vector<16x128xf32>
    tpu.vector_store %arg3[%c0_3, %c0_4], %3 {strides = array<i32>} : memref<16x128xf32, #tpu.memory_space<vmem>>, vector<16x128xf32>,
    return
  }
  func.func @transform_0(%arg0: i32) -> (i32, i32) {
    %c0_i32 = arith.constant 0 : i32
    %c0_i32_0 = arith.constant 0 : i32
    return %arg0, %c0_i32 : i32, i32
  }
  func.func @transform_1(%arg0: i32) -> (i32, i32) {
    %c0_i32 = arith.constant 0 : i32
    %c0_i32_0 = arith.constant 0 : i32
    return %arg0, %c0_i32 : i32, i32
  }
  func.func @transform_2(%arg0: i32) -> (i32, i32) {
    %c0_i32 = arith.constant 0 : i32
    %c0_i32_0 = arith.constant 0 : i32
    return %arg0, %c0_i32 : i32, i32
  }
}

</mosaic_0001>

<llo_original>
// kernel: tpu_custom_call.1
$region0: #{tpu_custom_call.1}
  #allocation0 [shape = 'u32[]', space=smem, size = 0x4, offset = 0x4, fixed_abs, tag = 'smem constant byte address 0x4 - core index']
  #allocation1 [shape = 'u32[144,128]{1,0:T(1,128)}', space=vmem, size = 0x12000, scoped, tag = 'internal scratch']
  %s0 = inlined_call_operand.vmem [shape: f32[16,1], index: 0, kind: input, shape index: {}]
  %s1 = inlined_call_operand.vmem [shape: f32[16,128], index: 1, kind: input, shape index: {}]
  %s2 = inlined_call_operand.hbm [shape: f32[16,128], index: 2, kind: output, shape index: {}]
  %s3 = sld [smem:[#allocation0]]
  $region18: #{tpu_custom_call.1} parent=0
    _
  %s5 = ssub.s32 1, %s3
  %s6 = scalar_select 0, %s5, %s3
  $region1: #{tpu_custom_call.1} parent=0
    #allocation2 [shape = 'u8[8192]{0}', space=vmem, size = 0x2000, scoped, tag = 'output window, operand 0, single buffered']
    #allocation3 [shape = 's32[1]{0}', space=sflag, size = 0x4, scoped, tag = 'scoped memory for tpu_custom_call.1']
    %7 = vsyncpa [#allocation3], 0
    // Predicated region
    $region2: #{tpu_custom_call.1} parent=1 // pred_check
      _
    $region3: #{tpu_custom_call.1} parent=1 // pred_check_branch
      %9 = sbr.rel (0) target = $region5
    $region4: #{tpu_custom_call.1} parent=1 // pred_region
      _
    $region5: #{tpu_custom_call.1} parent=1 // pred_fallthru
      _
    // Predicated region
    $region6: #{tpu_custom_call.1} parent=1 // pred_check
      _
    $region7: #{tpu_custom_call.1} parent=1 // pred_check_branch
      %11 = sbr.rel (0) target = $region9
    $region8: #{tpu_custom_call.1} parent=1 // pred_region
      _
    $region9: #{tpu_custom_call.1} parent=1 // pred_fallthru
      _
    %v12 = vld [vmem:[%s1] sm:$0xff]
    %v13 = vld [vmem:[%s1 + $0x8] sm:$0xff]
    %v14 = vld [vmem:[%s0] sm:$0xff]
    %v15 = vld [vmem:[%s0 + $0x8] sm:$0xff]
    %17 = vset.pattern.permute.xlu0 0
    %18 = vperm.xlu0 %17, %v14
    %v19 = vpop.permute.xlu0 %18
    %22 = vset.pattern.permute.xlu0 0
    %23 = vperm.xlu0 %22, %v15
    %v24 = vpop.permute.xlu0 %23
    %v26 = vmul.f32 %v12, %v19
    %v27 = vmul.f32 %v13, %v24
    %28 = vst [vmem:[#allocation2] sm:$0xff] %v26
    %29 = vst [vmem:[#allocation2 + $0x8] sm:$0xff] %v27
    // Predicated region
    $region10: #{tpu_custom_call.1} parent=1 // pred_check
      _
    $region11: #{tpu_custom_call.1} parent=1 // pred_check_branch
      %31 = sbr.rel (0) target = $region13
    $region12: #{tpu_custom_call.1} parent=1 // pred_region
      %s33 = ssub.s32 256, 256
      %34 = vsyncadd [#allocation3], %s33
      %s35 = sshll.u32 [#allocation2], 4
      %s36 = int_to_ptr.vmem [resolvable:$true] %s35
      %41 = dma.vmem_to_hbm [thread:$0]  %s36, 256, %s2, [#allocation3], 128, 128, 8
    $region13: #{tpu_custom_call.1} parent=1 // pred_fallthru
      _
    // Predicated region
    $region14: #{tpu_custom_call.1} parent=1 // pred_check
      _
    $region15: #{tpu_custom_call.1} parent=1 // pred_check_branch
      %43 = sbr.rel (0) target = $region17
    $region16: #{tpu_custom_call.1} parent=1 // pred_region
      %44 = dma.done [#allocation3], 256
    $region17: #{tpu_custom_call.1} parent=1 // pred_fallthru
      _
    %45 = vsyncpa [#allocation3], 1

</llo_original>
